<compile_context>
chip_gen: v6e
topology: v6e:2x2x1
jax: 0.10.0
libtpu: 0.0.40
codegen_flags: <defaults>
</compile_context>

<pallas_src>
import math

import jax
import jax.numpy as jnp
from jax.experimental import pallas as pl
from jax.experimental.pallas import tpu as pltpu


# ----------------------------------------------------------------------------
# Pallas kernel: one lane-dense MXU matmul per lane tile.
#   w_ref : (Cout, KKp)  bf16   ridgelet filter bank, taps zero-padded to KKp
#   p_ref : (KKp, TL)    bf16   im2col patches, lane axis = flattened N*H*W
#   o_ref : (Cout, TL)   f32    lane-dense output tile (unmasked dense stores)
# ----------------------------------------------------------------------------
def ridgelet_conv_kernel(w_ref, p_ref, o_ref):
    o_ref[...] = jnp.dot(w_ref[...], p_ref[...],
                         preferred_element_type=jnp.float32)


# ----------------------------------------------------------------------------
# Tiny parameter preprocessing (plain JAX): ridgelet filter bank.
# ----------------------------------------------------------------------------
def _ridgelet_filter_bank(scales, directions, positions,
                          out_channels, kernel_size, num_kernels):
    K = kernel_size
    P = out_channels * num_kernels
    center = K // 2
    coords = jnp.arange(K, dtype=jnp.float32) - center
    x1 = jnp.broadcast_to(coords[:, None], (K, K))   # torch.meshgrid 'ij': rows
    x2 = jnp.broadcast_to(coords[None, :], (K, K))   # cols
    d = directions.reshape(P, 1, 1)
    s = scales.reshape(P, 1, 1)
    pz = positions.reshape(P, 1, 1)
    tc = (x1[None] * jnp.cos(d) + x2[None] * jnp.sin(d) - pz) / s
    tc2 = tc * tc
    per = jnp.exp(-tc2 / 2.0) - 0.5 * jnp.exp(-tc2 / 8.0)            # (P,K,K)
    return per.reshape(out_channels, num_kernels, K, K).sum(axis=1)   # (OC,K,K)


# ----------------------------------------------------------------------------
# Wrapper: full RidgeletLayer.forward  (NCHW in, NCHW out)
# ----------------------------------------------------------------------------
def ridgelet_forward(x, scales, directions, positions,
                     in_channels, out_channels, kernel_size, num_kernels,
                     lane_tile_max=8192):
    K = kernel_size
    # SAME-size output (padding = K//2) matches PyTorch Conv2d only for odd K;
    # the module is used with odd K (e.g. 5).
    assert K % 2 == 1, "odd kernel_size assumed (matches module usage)"
    pad = K // 2
    N, Cin, H, W = x.shape
    assert Cin == in_channels
    KK = K * K
    HW = H * W
    L = N * HW

    # tap (contraction) axis padded to a bf16-sublane-friendly multiple of 16
    KKp = ((KK + 15) // 16) * 16

    # lane axis (flattened N*H*W): pad to a multiple of 128, then tile it
    Lp = ((L + 127) // 128) * 128
    TL = min(lane_tile_max, Lp)
    Lp = ((Lp + TL - 1) // TL) * TL          # make Lp a multiple of TL
    grid = (Lp // TL,)

    # ---- ridgelet filter bank -> (Cout, KKp) bf16 ---------------------------
    k_oc = _ridgelet_filter_bank(scales, directions, positions,
                                 out_channels, K, num_kernels)
    w_flat = k_oc.reshape(out_channels, KK)
    w_flat = jnp.pad(w_flat, ((0, 0), (0, KKp - KK))).astype(jnp.bfloat16)

    # ---- Cin pre-sum (filter is channel-replicated), SAME pad, bf16 im2col --
    xs = jnp.sum(x.astype(jnp.float32), axis=1)                      # (N,H,W)
    xs_pad = jnp.pad(xs, ((0, 0), (pad, pad), (pad, pad))).astype(jnp.bfloat16)
    # patches[ki*K+kj, n*HW + h*W + w] = xs_pad[n, h+ki, w+kj]
    patches = jnp.stack(
        [xs_pad[:, ki:ki + H, kj:kj + W].reshape(L)
         for ki in range(K) for kj in range(K)],
        axis=0)                                                       # (KK, L) bf16
    patches = jnp.pad(patches, ((0, KKp - KK), (0, Lp - L)))          # (KKp, Lp)

    # ---- Pallas conv: (Cout, KKp) @ (KKp, TL) per lane tile -----------------
    out_flat = pl.pallas_call(
        ridgelet_conv_kernel,
        out_shape=jax.ShapeDtypeStruct((out_channels, Lp), jnp.float32),
        grid=grid,
        in_specs=[
            pl.BlockSpec((out_channels, KKp), lambda i: (0, 0)),   # resident weights
            pl.BlockSpec((KKp, TL), lambda i: (0, i)),             # lane tile of patches
        ],
        out_specs=pl.BlockSpec((out_channels, TL), lambda i: (0, i)),
        compiler_params=pltpu.CompilerParams(
            dimension_semantics=("parallel",),
            vmem_limit_bytes=32 * 1024 * 1024),
    )(w_flat, patches)

    # single small wrapper-side relayout back to NCHW
    out = out_flat[:, :L].reshape(out_channels, N, HW)
    out = jnp.transpose(out, (1, 0, 2)).reshape(N, out_channels, H, W)
    return out


# ----------------------------------------------------------------------------
# Pure-JAX reference (mirrors the PyTorch forward exactly), for verification.
# ----------------------------------------------------------------------------
def reference_forward(x, scales, directions, positions,
                      in_channels, out_channels, kernel_size, num_kernels):
    K = kernel_size
    pad = K // 2
    N, Cin, H, W = x.shape
    k_oc = _ridgelet_filter_bank(scales, directions, positions,
                                 out_channels, K, num_kernels)
    w = jnp.broadcast_to(k_oc[:, None], (out_channels, Cin, K, K))
    xp = jnp.pad(x, ((0, 0), (0, 0), (pad, pad), (pad, pad)))
    out = jnp.zeros((N, out_channels, H, W), jnp.float32)
    for ki in range(K):
        for kj in range(K):
            out = out + jnp.einsum(
                'nchw,oc->nohw',
                xp[:, :, ki:ki + H, kj:kj + W], w[:, :, ki, kj],
                precision=jax.lax.Precision.HIGHEST)
    return out


if __name__ == "__main__":
    # small shapes consistent with the module
    N, Cin, H, W = 2, 4, 16, 16
    Cout, K, NK = 8, 5, 2

    key = jax.random.PRNGKey(0)
    x = jax.random.normal(key, (N, Cin, H, W), dtype=jnp.float32)

    # deterministic parameter init, exactly as in RidgeletLayer.__init__
    scales = jnp.ones((Cout * NK,), jnp.float32)
    directions = jnp.linspace(0.0, math.pi, Cout * NK, dtype=jnp.float32)
    positions = jnp.zeros((Cout * NK,), jnp.float32)

    out = ridgelet_forward(x, scales, directions, positions, Cin, Cout, K, NK)
    out = jax.block_until_ready(out)

    ref = reference_forward(x, scales, directions, positions, Cin, Cout, K, NK)
    max_err = float(jnp.max(jnp.abs(out - ref)))
    scale_ref = float(jnp.max(jnp.abs(ref))) + 1.0
    assert out.shape == (N, Cout, H, W), out.shape
    assert max_err <= 5e-2 * scale_ref, f"max_err={max_err}"
    print("KERNEL_OK")
</pallas_src>

<mosaic_0001>
module attributes {stable_mosaic.version = 11 : i64} {
  func.func @ridgelet_conv_kernel(%arg0: i32, %arg1: memref<8x32xbf16, #tpu.memory_space<vmem>>, %arg2: memref<32x512xbf16, #tpu.memory_space<vmem>>, %arg3: memref<8x512xf32, #tpu.memory_space<vmem>>) attributes {dimension_semantics = [#tpu.dimension_semantics<parallel>], iteration_bounds = array<i64: 1>, scalar_prefetch = 0 : i64, scratch_operands = 0 : i64, tpu.core_type = #tpu.core_type<tc>, window_params = [{pipeline_mode = #tpu.pipeline_mode<synchronous>, transform_indices = @transform_0, window_bounds = array<i64: 8, 32>}, {transform_indices = @transform_1, window_bounds = array<i64: 32, 512>}, {transform_indices = @transform_2, window_bounds = array<i64: 8, 512>}]} {
    %c0 = arith.constant 0 : index
    %c0_0 = arith.constant 0 : index
    %0 = vector.load %arg1[%c0, %c0_0] : memref<8x32xbf16, #tpu.memory_space<vmem>>, vector<8x32xbf16>
    %c0_1 = arith.constant 0 : index
    %c0_2 = arith.constant 0 : index
    %1 = vector.load %arg2[%c0_1, %c0_2] : memref<32x512xbf16, #tpu.memory_space<vmem>>, vector<32x512xbf16>
    %cst = arith.constant dense<0.000000e+00> : vector<8x512xf32>
    %2 = tpu.matmul %0, %1, %cst {dimension_numbers = #tpu.dot_dimension_numbers<[1], [0], [0], [1], [0, 0, 1, 1], [], []>} : vector<8x32xbf16>, vector<32x512xbf16>, vector<8x512xf32> -> vector<8x512xf32>
    %c0_3 = arith.constant 0 : index
    %c0_4 = arith.constant 0 : index
    %3 = vector.load %arg3[%c0_3, %c0_4] : memref<8x512xf32, #tpu.memory_space<vmem>>, vector<8x512xf32>
    tpu.vector_store %arg3[%c0_3, %c0_4], %2 {strides = array<i32>} : memref<8x512xf32, #tpu.memory_space<vmem>>, vector<8x512xf32>,
    return
  }
  func.func @transform_0(%arg0: i32) -> (i32, i32) {
    %c0_i32 = arith.constant 0 : i32
    %c0_i32_0 = arith.constant 0 : i32
    %c0_i32_1 = arith.constant 0 : i32
    return %c0_i32, %c0_i32_0 : i32, i32
  }
  func.func @transform_1(%arg0: i32) -> (i32, i32) {
    %c0_i32 = arith.constant 0 : i32
    %c0_i32_0 = arith.constant 0 : i32
    return %c0_i32, %arg0 : i32, i32
  }
  func.func @transform_2(%arg0: i32) -> (i32, i32) {
    %c0_i32 = arith.constant 0 : i32
    %c0_i32_0 = arith.constant 0 : i32
    return %c0_i32, %arg0 : i32, i32
  }
}

</mosaic_0001>

<llo_original>
// kernel: tpu_custom_call.1
$region0: #{tpu_custom_call.1}
  #allocation0 [shape = 'u32[]', space=smem, size = 0x4, offset = 0x4, fixed_abs, tag = 'smem constant byte address 0x4 - core index']
  #allocation1 [shape = 'u32[144,128]{1,0:T(1,128)}', space=vmem, size = 0x12000, scoped, tag = 'internal scratch']
  %s0 = inlined_call_operand.hbm [shape: bf16[8,32], index: 0, kind: input, shape index: {}]
  %s1 = inlined_call_operand.hbm [shape: bf16[32,512], index: 1, kind: input, shape index: {}]
  %s2 = inlined_call_operand.hbm [shape: f32[8,512], index: 2, kind: output, shape index: {}]
  %s3 = sld [smem:[#allocation0]]
  $region26: #{tpu_custom_call.1} parent=0
    _
  %s5 = ssub.s32 1, %s3
  %s6 = scalar_select 0, %s5, %s3
  $region1: #{tpu_custom_call.1} parent=0
    #allocation2 [shape = 'u8[2048]{0}', space=vmem, size = 0x800, scoped, tag = 'input window, operand 0, single buffered']
    #allocation3 [shape = 's32[1]{0}', space=sflag, size = 0x4, scoped, tag = 'scoped memory for tpu_custom_call.1']
    #allocation4 [shape = 's32[1]{0}', space=sflag, size = 0x4, scoped, tag = 'scoped memory for tpu_custom_call.1']
    #allocation5 [shape = 'u8[32768]{0}', space=vmem, size = 0x8000, scoped, tag = 'input window, operand 1, single buffered']
    #allocation6 [shape = 's32[1]{0}', space=sflag, size = 0x4, scoped, tag = 'scoped memory for tpu_custom_call.1']
    #allocation7 [shape = 'u8[16384]{0}', space=vmem, size = 0x4000, scoped, tag = 'output window, operand 0, single buffered']
    %7 = vsyncpa [#allocation3], 0
    %8 = vsyncpa [#allocation6], 0
    %9 = vsyncpa [#allocation4], 0
    // Predicated region
    $region2: #{tpu_custom_call.1} parent=1 // pred_check
      _
    $region3: #{tpu_custom_call.1} parent=1 // pred_check_branch
      %11 = sbr.rel (0) target = $region5
    $region4: #{tpu_custom_call.1} parent=1 // pred_region
      %s13 = ssub.s32 64, 64
      %14 = vsyncadd [#allocation3], %s13
      %s16 = sshll.u32 [#allocation2], 4
      %s17 = int_to_ptr.vmem [resolvable:$true] %s16
      %19 = dma.hbm_to_vmem [thread:$0]  %s0, 64, %s17, [#allocation3]
    $region5: #{tpu_custom_call.1} parent=1 // pred_fallthru
      _
    // Predicated region
    $region6: #{tpu_custom_call.1} parent=1 // pred_check
      _
    $region7: #{tpu_custom_call.1} parent=1 // pred_check_branch
      %21 = sbr.rel (0) target = $region9
    $region8: #{tpu_custom_call.1} parent=1 // pred_region
      %s23 = ssub.s32 1024, 1024
      %24 = vsyncadd [#allocation6], %s23
      %s25 = sshll.u32 [#allocation5], 4
      %s26 = int_to_ptr.vmem [resolvable:$true] %s25
      %31 = dma.hbm_to_vmem [thread:$0]  %s1, 1024, %s26, [#allocation6], 256, 256, 16
    $region9: #{tpu_custom_call.1} parent=1 // pred_fallthru
      _
    // Predicated region
    $region10: #{tpu_custom_call.1} parent=1 // pred_check
      _
    $region11: #{tpu_custom_call.1} parent=1 // pred_check_branch
      %33 = sbr.rel (0) target = $region13
    $region12: #{tpu_custom_call.1} parent=1 // pred_region
      %34 = dma.done [#allocation3], 64
    $region13: #{tpu_custom_call.1} parent=1 // pred_fallthru
      _
    // Predicated region
    $region14: #{tpu_custom_call.1} parent=1 // pred_check
      _
    $region15: #{tpu_custom_call.1} parent=1 // pred_check_branch
      %36 = sbr.rel (0) target = $region17
    $region16: #{tpu_custom_call.1} parent=1 // pred_region
      %37 = dma.done [#allocation6], 1024
    $region17: #{tpu_custom_call.1} parent=1 // pred_fallthru
      _
    %v39 = vld [vmem:[#allocation2] sm:$0xf]
    %v40 = vld [vmem:[#allocation5] sm:$0xff]
    %v41 = vld [vmem:[#allocation5 + $0x8] sm:$0xff]
    %v42 = vld [vmem:[#allocation5 + $0x10] sm:$0xff]
    %v43 = vld [vmem:[#allocation5 + $0x18] sm:$0xff]
    %v44 = vld [vmem:[#allocation5 + $0x20] sm:$0xff]
    %v45 = vld [vmem:[#allocation5 + $0x28] sm:$0xff]
    %v46 = vld [vmem:[#allocation5 + $0x30] sm:$0xff]
    %v47 = vld [vmem:[#allocation5 + $0x38] sm:$0xff]
    %v56 = vunpack.c.l.b16 %v40
    %v57 = vunpack.c.h.b16 %v40
    %v58 = vunpack.c.l.b16 %v41
    %v59 = vunpack.c.h.b16 %v41
    %v60 = vunpack.c.l.b16 %v42
    %v61 = vunpack.c.h.b16 %v42
    %v62 = vunpack.c.l.b16 %v43
    %v63 = vunpack.c.h.b16 %v43
    %v64 = vunpack.c.l.b16 %v44
    %v65 = vunpack.c.h.b16 %v44
    %v66 = vunpack.c.l.b16 %v45
    %v67 = vunpack.c.h.b16 %v45
    %v68 = vunpack.c.l.b16 %v46
    %v69 = vunpack.c.h.b16 %v46
    %v70 = vunpack.c.l.b16 %v47
    %v71 = vunpack.c.h.b16 %v47
    %v72 = vpack.c.b16 %v60, %v56
    %v73 = vpack.c.b16 %v61, %v57
    %v74 = vpack.c.b16 %v62, %v58
    %v75 = vpack.c.b16 %v63, %v59
    %v76 = vpack.c.b16 %v68, %v64
    %v77 = vpack.c.b16 %v69, %v65
    %v78 = vpack.c.b16 %v70, %v66
    %v79 = vpack.c.b16 %v71, %v67
    %vm88 = vcmask 261120
    %v90 = vsel %vm88, %v39, 0
    %92 = vmatprep.subr.bf16.mxu0 0
    %93 = vmatpush1.bf16.msra.mxu0 0
    %94 = vmatprep.subr.bf16.mxu0 0
    %95 = vmatpush1.bf16.msra.mxu0 0
    %96 = vmatprep.subr.bf16.mxu0 0
    %97 = vmatpush1.bf16.msra.mxu0 0
    %98 = vmatprep.subr.bf16.mxu0 0
    %99 = vmatpush1.bf16.msra.mxu0 0
    %100 = vmatprep.subr.bf16.mxu0 0
    %101 = vmatpush1.bf16.msra.mxu0 0
    %102 = vmatprep.subr.bf16.mxu0 0
    %103 = vmatpush1.bf16.msra.mxu0 0
    %104 = vmatprep.subr.bf16.mxu0 %v77
    %105 = vmatpush1.bf16.msra.mxu0 %v76
    %106 = vmatprep.subr.bf16.mxu0 %v73
    %107 = vmatpush1.bf16.msra.mxu0 %v72
    %108 = vmatprep.subr.bf16.mxu0 0
    %109 = vmatpush2.bf16.msra.mxu0 0
    %110 = vmatprep.subr.bf16.mxu0 0
    %111 = vmatpush2.bf16.msra.mxu0 0
    %112 = vmatprep.subr.bf16.mxu0 0
    %113 = vmatpush2.bf16.msra.mxu0 0
    %114 = vmatprep.subr.bf16.mxu0 0
    %115 = vmatpush2.bf16.msra.mxu0 0
    %116 = vmatprep.subr.bf16.mxu0 0
    %117 = vmatpush2.bf16.msra.mxu0 0
    %118 = vmatprep.subr.bf16.mxu0 0
    %119 = vmatpush2.bf16.msra.mxu0 0
    %120 = vmatprep.subr.bf16.mxu0 0
    %121 = vmatpush2.bf16.msra.mxu0 0
    %122 = vmatprep.subr.bf16.mxu0 0
    %123 = vmatpush2.bf16.msra.mxu0 0
    %124 = vmatprep.mubr.bf16.mxu0 0
    %125 = vmatmul.mubr.bf16.gmra.mxu0 %v90
    %v126 = vpop.f32.mrf.mxu0
    %v127 = vadd.f32 0.0, %v126
    %v128 = vpop.f32.mrf.mxu0
    %v129 = vadd.f32 0.0, %v128
    %v130 = vpop.f32.mrf.mxu0
    %v131 = vpop.f32.mrf.mxu0
    %132 = vdwg.mxu0
    %133 = vmatprep.subr.bf16.mxu0 0
    %134 = vmatpush1.bf16.msra.mxu0 0
    %135 = vmatprep.subr.bf16.mxu0 0
    %136 = vmatpush1.bf16.msra.mxu0 0
    %137 = vmatprep.subr.bf16.mxu0 0
    %138 = vmatpush1.bf16.msra.mxu0 0
    %139 = vmatprep.subr.bf16.mxu0 0
    %140 = vmatpush1.bf16.msra.mxu0 0
    %141 = vmatprep.subr.bf16.mxu0 0
    %142 = vmatpush1.bf16.msra.mxu0 0
    %143 = vmatprep.subr.bf16.mxu0 0
    %144 = vmatpush1.bf16.msra.mxu0 0
    %145 = vmatprep.subr.bf16.mxu0 %v79
    %146 = vmatpush1.bf16.msra.mxu0 %v78
    %147 = vmatprep.subr.bf16.mxu0 %v75
    %148 = vmatpush1.bf16.msra.mxu0 %v74
    %149 = vmatprep.subr.bf16.mxu0 0
    %150 = vmatpush2.bf16.msra.mxu0 0
    %151 = vmatprep.subr.bf16.mxu0 0
    %152 = vmatpush2.bf16.msra.mxu0 0
    %153 = vmatprep.subr.bf16.mxu0 0
    %154 = vmatpush2.bf16.msra.mxu0 0
    %155 = vmatprep.subr.bf16.mxu0 0
    %156 = vmatpush2.bf16.msra.mxu0 0
    %157 = vmatprep.subr.bf16.mxu0 0
    %158 = vmatpush2.bf16.msra.mxu0 0
    %159 = vmatprep.subr.bf16.mxu0 0
    %160 = vmatpush2.bf16.msra.mxu0 0
    %161 = vmatprep.subr.bf16.mxu0 0
    %162 = vmatpush2.bf16.msra.mxu0 0
    %163 = vmatprep.subr.bf16.mxu0 0
    %164 = vmatpush2.bf16.msra.mxu0 0
    %165 = vmatprep.mubr.bf16.mxu0 0
    %166 = vmatmul.mubr.bf16.gmra.mxu0 %v90
    %v167 = vpop.f32.mrf.mxu0
    %v168 = vadd.f32 0.0, %v167
    %v169 = vpop.f32.mrf.mxu0
    %v170 = vadd.f32 0.0, %v169
    %v171 = vpop.f32.mrf.mxu0
    %v172 = vpop.f32.mrf.mxu0
    %173 = vdwg.mxu0
    %174 = vst [vmem:[#allocation7] sm:$0xff] %v127
    %175 = vst [vmem:[#allocation7 + $0x8] sm:$0xff] %v129
    %176 = vst [vmem:[#allocation7 + $0x10] sm:$0xff] %v168
    %177 = vst [vmem:[#allocation7 + $0x18] sm:$0xff] %v170
    // Predicated region
    $region18: #{tpu_custom_call.1} parent=1 // pred_check
      _
    $region19: #{tpu_custom_call.1} parent=1 // pred_check_branch
      %179 = sbr.rel (0) target = $region21
    $region20: #{tpu_custom_call.1} parent=1 // pred_region
      %s181 = ssub.s32 512, 512
      %182 = vsyncadd [#allocation4], %s181
      %s184 = sshll.u32 [#allocation7], 4
      %s185 = int_to_ptr.vmem [resolvable:$true] %s184
      %187 = dma.vmem_to_hbm [thread:$0]  %s185, 512, %s2, [#allocation4]
    $region21: #{tpu_custom_call.1} parent=1 // pred_fallthru
      _
    // Predicated region
    $region22: #{tpu_custom_call.1} parent=1 // pred_check
      _
    $region23: #{tpu_custom_call.1} parent=1 // pred_check_branch
      %189 = sbr.rel (0) target = $region25
    $region24: #{tpu_custom_call.1} parent=1 // pred_region
      %190 = dma.done [#allocation4], 512
    $region25: #{tpu_custom_call.1} parent=1 // pred_fallthru
      _
    %191 = vsyncpa [#allocation3], 1
    %192 = vsyncpa [#allocation6], 1
    %193 = vsyncpa [#allocation4], 1

</llo_original>
